<compile_context>
chip_gen: v6e
topology: v6e:2x2x1
jax: 0.10.0
libtpu: 0.0.40
codegen_flags: <defaults>
</compile_context>

<pallas_src>
import functools

import numpy as np
import jax
import jax.numpy as jnp
from jax import lax
from jax.experimental import pallas as pl
from jax.experimental.pallas import tpu as pltpu


# ---------------------------------------------------------------------------
# Fused kernel: gate -> conv1 -> conv2 -> conv3 (BN folded, ReLU)
# ---------------------------------------------------------------------------
def _decoder_kernel(hp_ref, dp_ref,
                    b1_ref, s1_ref, t1_ref,
                    b2_ref, s2_ref, t2_ref,
                    b3_ref, s3_ref, t3_ref,
                    o_ref, *, img_rows):
    """Packed lane-dense layout, multiple images stacked along rows.

    hp_ref/dp_ref : (M, W*C0)           M = Bn*H rows (Bn images per step)
    b*_ref        : (3*W*Cin, W*Cout)   K-folded banded conv weights
    s*_ref/t*_ref : (1, W*Cout)         folded-BN scale / bias (tiled over W)
    o_ref         : (M, W*C_out)
    img_rows      : H (rows per image) -- static, via functools.partial
    """
    M = hp_ref.shape[0]
    H = img_rows

    # --- gate: sigmoid(diff) * high ----------------------------------------
    # sigmoid(x) = 0.5*tanh(x/2)+0.5: tanh runs on the EUP slot (no VPU
    # divide) and cannot overflow like exp(-x).  Kept in f32.
    d = dp_ref[...].astype(jnp.float32)
    h = hp_ref[...].astype(jnp.float32)
    x = h * (0.5 * jnp.tanh(0.5 * d) + 0.5)                    # (M, W*C0)

    def shifted_lhs(x_in):
        """(M, K) -> (M, 3K): the three vertically shifted copies (dy=0,1,2)
        with per-image SAME zero rows.  Shifts are in-vreg sublane rolls
        (XLU); masks zero the rows that wrapped across image / array edges.
        """
        rid = lax.broadcasted_iota(jnp.int32, x_in.shape, 0)   # global row id
        if (H & (H - 1)) == 0:
            r = jnp.bitwise_and(rid, H - 1)                    # row within image
        else:
            r = rid % H
        dn = jnp.where(r != 0,
                       pltpu.roll(x_in, 1, axis=0), 0.0)       # in[h-1] (dy=0)
        up = jnp.where(r != H - 1,
                       pltpu.roll(x_in, M - 1, axis=0), 0.0)   # in[h+1] (dy=2)
        return jnp.concatenate([dn, x_in, up], axis=1)         # dy = 0,1,2

    def conv_bn_relu(x_in, b_ref, s_ref, t_ref):
        lhs = shifted_lhs(x_in).astype(b_ref.dtype)            # (M, 3*W*Cin)
        y = jnp.dot(lhs, b_ref[...],                           # single MXU matmul
                    preferred_element_type=jnp.float32)
        y = y * s_ref[...] + t_ref[...]                        # folded BatchNorm
        return jnp.maximum(y, 0.0)                             # ReLU

    x = conv_bn_relu(x, b1_ref, s1_ref, t1_ref)                # (M, W*C1)
    x = conv_bn_relu(x, b2_ref, s2_ref, t2_ref)                # (M, W*C1)
    x = conv_bn_relu(x, b3_ref, s3_ref, t3_ref)                # (M, W*C2)

    o_ref[...] = x.astype(o_ref.dtype)                         # 128-lane dense store


# ---------------------------------------------------------------------------
# Parameter packing (wrapper side, done once)
# ---------------------------------------------------------------------------
def _band_weights(w_hwio, W):
    """Fold the 3 horizontal taps + horizontal SAME padding of a 3x3 conv into
    banded matrices B[dy] : (W*Cin, W*Cout) acting on packed (rows, W*Cin):

      B[dy, wi*Cin+ci, wo*Cout+co] = w[dy, wi-wo+1, ci, co]  if |wi-wo| <= 1
    """
    kh, kw, cin, cout = w_hwio.shape
    wi = np.arange(W)[None, :, None]
    wo = np.arange(W)[None, None, :]
    dx = np.arange(kw)[:, None, None]
    sel = jnp.asarray((wi == wo + dx - (kw // 2)).astype(np.float32))  # (kw,W,W)
    b = jnp.einsum('xio,yxcd->yicod', sel, w_hwio)        # (kh, W, cin, W, cout)
    return b.reshape(kh, W * cin, W * cout)


def fold_bn(gamma, beta, mean, var, eps=1e-5):
    scale = gamma / jnp.sqrt(var + eps)
    bias = beta - mean * scale
    return scale.astype(jnp.float32), bias.astype(jnp.float32)


def prepare_params(params, W, matmul_dtype=jnp.float32):
    """Banded weights K-folded over the 3 vertical taps + W-tiled BN affines.

    matmul_dtype=jnp.bfloat16 halves weight bytes and speeds up the MXU
    (loosen test tolerance to ~1e-2 if used); default f32.
    """
    packed = []
    for p in params:
        cout = p["w"].shape[-1]
        B = _band_weights(p["w"].astype(jnp.float32), W)   # (3, W*Cin, W*Cout)
        B = B.reshape(3 * B.shape[1], W * cout)            # K-fold: dy-major rows
        packed.append(dict(
            B=B.astype(matmul_dtype),
            s=jnp.tile(p["scale"].astype(jnp.float32), W).reshape(1, W * cout),
            t=jnp.tile(p["bias"].astype(jnp.float32), W).reshape(1, W * cout),
        ))
    return packed


def init_decoder_params(key, high_channel, middle_channel, out_channel):
    """Deterministic synthetic parameters (PyTorch-like shapes, converted)."""
    def one_layer(k, cin, cout):
        k_w, k_g, k_b, k_m, k_v = jax.random.split(k, 5)
        w_oihw = jax.random.normal(k_w, (cout, cin, 3, 3), jnp.float32) * 0.1
        w_hwio = jnp.transpose(w_oihw, (2, 3, 1, 0))          # HWIO
        gamma = 1.0 + 0.1 * jax.random.normal(k_g, (cout,), jnp.float32)
        beta = 0.1 * jax.random.normal(k_b, (cout,), jnp.float32)
        mean = 0.1 * jax.random.normal(k_m, (cout,), jnp.float32)
        var = jnp.abs(jax.random.normal(k_v, (cout,), jnp.float32)) + 0.5
        scale, bias = fold_bn(gamma, beta, mean, var)         # folded inference BN
        return dict(w=w_hwio, scale=scale, bias=bias)

    k1, k2, k3 = jax.random.split(key, 3)
    return [
        one_layer(k1, high_channel, middle_channel),
        one_layer(k2, middle_channel, middle_channel),
        one_layer(k3, middle_channel, out_channel),
    ]


def _pick_images_per_step(n, h, target_rows=256):
    """Images per grid step: raise matmul M / amortize per-step overhead,
    but keep >=2 grid steps (v7x megacore) when that still leaves >=128 rows."""
    divs = [d for d in range(1, n + 1) if n % d == 0]
    fitting = [d for d in divs if d * h <= target_rows] or [1]
    bn = max(fitting)
    two_step = [d for d in fitting if n // d >= 2 and d * h >= 128]
    if two_step:
        bn = max(two_step)
    return bn


# ---------------------------------------------------------------------------
# Forward: single fused pallas_call
# ---------------------------------------------------------------------------
@jax.jit
def decoder_forward(high_nchw, diff_nchw, packed_params):
    N, C0, H, W = high_nchw.shape
    p1, p2, p3 = packed_params
    C2 = p3["B"].shape[1] // W

    bn = _pick_images_per_step(N, H)
    grid_n = N // bn
    M = bn * H

    # NCHW (PyTorch interface) -> packed lane-dense rows (N*H, W*C),
    # channel fastest.  The trailing reshape is a free row-major collapse.
    # TODO(synk): at production sizes keep activations in this packed layout
    # end-to-end (or fold the relayout into the kernel); Mosaic has no clean
    # in-kernel 4-D NCHW transpose today, so the boundary copies stay in XLA.
    # (high/diff are kept as two inputs: merging them would need an extra
    # wrapper-side concatenate/HBM pass just to save one DMA descriptor.)
    hp = jnp.transpose(high_nchw, (0, 2, 3, 1)).reshape(N * H, W * C0)
    dp = jnp.transpose(diff_nchw, (0, 2, 3, 1)).reshape(N * H, W * C0)

    def act_spec(cols):
        return pl.BlockSpec((M, cols), lambda i: (i, 0))

    def const_spec(a):   # constant-index block: fetched once, stays resident
        return pl.BlockSpec(a.shape, lambda i, nd=a.ndim: (0,) * nd)

    grid_spec = pltpu.PrefetchScalarGridSpec(
        num_scalar_prefetch=0,
        grid=(grid_n,),
        in_specs=[
            act_spec(W * C0), act_spec(W * C0),
            const_spec(p1["B"]), const_spec(p1["s"]), const_spec(p1["t"]),
            const_spec(p2["B"]), const_spec(p2["s"]), const_spec(p2["t"]),
            const_spec(p3["B"]), const_spec(p3["s"]), const_spec(p3["t"]),
        ],
        out_specs=act_spec(W * C2),
    )

    out_packed = pl.pallas_call(
        functools.partial(_decoder_kernel, img_rows=H),
        out_shape=jax.ShapeDtypeStruct((N * H, W * C2), high_nchw.dtype),
        grid_spec=grid_spec,
        compiler_params=pltpu.CompilerParams(
            dimension_semantics=("parallel",)),
    )(hp, dp,
      p1["B"], p1["s"], p1["t"],
      p2["B"], p2["s"], p2["t"],
      p3["B"], p3["s"], p3["t"])

    # packed (N*H, W*C2) -> NCHW
    return jnp.transpose(out_packed.reshape(N, H, W, C2), (0, 3, 1, 2))


# ---------------------------------------------------------------------------
# Pure-JAX reference (same math) for correctness check.
# ---------------------------------------------------------------------------
def reference_forward(high_nchw, diff_nchw, params):
    x = jax.nn.sigmoid(diff_nchw) * high_nchw
    x = jnp.transpose(x, (0, 2, 3, 1))  # NHWC
    for p in params:
        x = lax.conv_general_dilated(
            x, p["w"], window_strides=(1, 1), padding="SAME",
            dimension_numbers=("NHWC", "HWIO", "NHWC"))
        x = x * p["scale"] + p["bias"]
        x = jnp.maximum(x, 0.0)
    return jnp.transpose(x, (0, 3, 1, 2))


if __name__ == "__main__":
    # Decoder(high_channel=4, middle_channel=8, out_channel=8, num_classes=unused)
    N, HIGH_C, MID_C, OUT_C, H, W = 2, 4, 8, 8, 16, 16

    key = jax.random.PRNGKey(0)
    k_h, k_d, k_p = jax.random.split(key, 3)
    high_feature = jax.random.normal(k_h, (N, HIGH_C, H, W), jnp.float32)
    diff = jax.random.normal(k_d, (N, HIGH_C, H, W), jnp.float32)

    params = init_decoder_params(k_p, HIGH_C, MID_C, OUT_C)
    packed = prepare_params(params, W)          # f32 matmuls (tight tolerance)

    out = jax.block_until_ready(decoder_forward(high_feature, diff, packed))
    ref = jax.block_until_ready(reference_forward(high_feature, diff, params))

    np.testing.assert_allclose(np.asarray(out), np.asarray(ref),
                               rtol=2e-4, atol=2e-4)
    assert out.shape == (N, OUT_C, H, W)

    print("KERNEL_OK")
</pallas_src>

<mosaic_0001>
module attributes {stable_mosaic.version = 11 : i64} {
  func.func @_decoder_kernel(%arg0: i32, %arg1: memref<32x64xf32, #tpu.memory_space<vmem>>, %arg2: memref<32x64xf32, #tpu.memory_space<vmem>>, %arg3: memref<192x128xf32, #tpu.memory_space<vmem>>, %arg4: memref<1x128xf32, #tpu.memory_space<vmem>>, %arg5: memref<1x128xf32, #tpu.memory_space<vmem>>, %arg6: memref<384x128xf32, #tpu.memory_space<vmem>>, %arg7: memref<1x128xf32, #tpu.memory_space<vmem>>, %arg8: memref<1x128xf32, #tpu.memory_space<vmem>>, %arg9: memref<384x128xf32, #tpu.memory_space<vmem>>, %arg10: memref<1x128xf32, #tpu.memory_space<vmem>>, %arg11: memref<1x128xf32, #tpu.memory_space<vmem>>, %arg12: memref<32x128xf32, #tpu.memory_space<vmem>>) attributes {dimension_semantics = [#tpu.dimension_semantics<parallel>], iteration_bounds = array<i64: 1>, scalar_prefetch = 0 : i64, scratch_operands = 0 : i64, tpu.core_type = #tpu.core_type<tc>, window_params = [{transform_indices = @transform_0, window_bounds = array<i64: 32, 64>}, {transform_indices = @transform_1, window_bounds = array<i64: 32, 64>}, {pipeline_mode = #tpu.pipeline_mode<synchronous>, transform_indices = @transform_2, window_bounds = array<i64: 192, 128>}, {pipeline_mode = #tpu.pipeline_mode<synchronous>, transform_indices = @transform_3, window_bounds = array<i64: 1, 128>}, {pipeline_mode = #tpu.pipeline_mode<synchronous>, transform_indices = @transform_4, window_bounds = array<i64: 1, 128>}, {pipeline_mode = #tpu.pipeline_mode<synchronous>, transform_indices = @transform_5, window_bounds = array<i64: 384, 128>}, {pipeline_mode = #tpu.pipeline_mode<synchronous>, transform_indices = @transform_6, window_bounds = array<i64: 1, 128>}, {pipeline_mode = #tpu.pipeline_mode<synchronous>, transform_indices = @transform_7, window_bounds = array<i64: 1, 128>}, {pipeline_mode = #tpu.pipeline_mode<synchronous>, transform_indices = @transform_8, window_bounds = array<i64: 384, 128>}, {pipeline_mode = #tpu.pipeline_mode<synchronous>, transform_indices = @transform_9, window_bounds = array<i64: 1, 128>}, {pipeline_mode = #tpu.pipeline_mode<synchronous>, transform_indices = @transform_10, window_bounds = array<i64: 1, 128>}, {transform_indices = @transform_11, window_bounds = array<i64: 32, 128>}]} {
    %c0 = arith.constant 0 : index
    %c0_0 = arith.constant 0 : index
    %0 = vector.load %arg2[%c0, %c0_0] : memref<32x64xf32, #tpu.memory_space<vmem>>, vector<32x64xf32>
    %c0_1 = arith.constant 0 : index
    %c0_2 = arith.constant 0 : index
    %1 = vector.load %arg1[%c0_1, %c0_2] : memref<32x64xf32, #tpu.memory_space<vmem>>, vector<32x64xf32>
    %cst = arith.constant 5.000000e-01 : f32
    %2 = vector.broadcast %cst : f32 to vector<32x64xf32>
    %3 = arith.mulf %2, %0 : vector<32x64xf32>
    %4 = math.tanh %3 : vector<32x64xf32>
    %cst_3 = arith.constant 5.000000e-01 : f32
    %5 = vector.broadcast %cst_3 : f32 to vector<32x64xf32>
    %6 = arith.mulf %5, %4 : vector<32x64xf32>
    %cst_4 = arith.constant 5.000000e-01 : f32
    %7 = vector.broadcast %cst_4 : f32 to vector<32x64xf32>
    %8 = arith.addf %6, %7 : vector<32x64xf32>
    %9 = arith.mulf %1, %8 : vector<32x64xf32>
    %10 = tpu.iota {dimensions = array<i32: 0>} : vector<32x64xi32>
    %c15_i32 = arith.constant 15 : i32
    %11 = vector.broadcast %c15_i32 : i32 to vector<32x64xi32>
    %12 = arith.andi %10, %11 : vector<32x64xi32>
    %c0_i32 = arith.constant 0 : i32
    %13 = vector.broadcast %c0_i32 : i32 to vector<32x64xi32>
    %14 = arith.cmpi ne, %12, %13 : vector<32x64xi32>
    %c1_i32 = arith.constant 1 : i32
    %15 = tpu.dynamic_rotate %9 by %c1_i32 dim 0 : vector<32x64xf32>, i32 -> vector<32x64xf32>
    %cst_5 = arith.constant 0.000000e+00 : f32
    %16 = vector.broadcast %cst_5 : f32 to vector<32x64xf32>
    %17 = arith.select %14, %15, %16 : vector<32x64xi1>, vector<32x64xf32>
    %c15_i32_6 = arith.constant 15 : i32
    %18 = vector.broadcast %c15_i32_6 : i32 to vector<32x64xi32>
    %19 = arith.cmpi ne, %12, %18 : vector<32x64xi32>
    %c31_i32 = arith.constant 31 : i32
    %20 = tpu.dynamic_rotate %9 by %c31_i32 dim 0 : vector<32x64xf32>, i32 -> vector<32x64xf32>
    %cst_7 = arith.constant 0.000000e+00 : f32
    %21 = vector.broadcast %cst_7 : f32 to vector<32x64xf32>
    %22 = arith.select %19, %20, %21 : vector<32x64xi1>, vector<32x64xf32>
    %23 = tpu.concatenate %17, %9, %22 in 1 : vector<32x64xf32>, vector<32x64xf32>, vector<32x64xf32> -> vector<32x192xf32>
    %c0_8 = arith.constant 0 : index
    %c0_9 = arith.constant 0 : index
    %24 = vector.load %arg3[%c0_8, %c0_9] : memref<192x128xf32, #tpu.memory_space<vmem>>, vector<192x128xf32>
    %cst_10 = arith.constant dense<0.000000e+00> : vector<32x128xf32>
    %25 = tpu.matmul %23, %24, %cst_10 {dimension_numbers = #tpu.dot_dimension_numbers<[1], [0], [0], [1], [0, 0, 1, 1], [], []>} : vector<32x192xf32>, vector<192x128xf32>, vector<32x128xf32> -> vector<32x128xf32>
    %c0_11 = arith.constant 0 : index
    %c0_12 = arith.constant 0 : index
    %26 = vector.load %arg4[%c0_11, %c0_12] : memref<1x128xf32, #tpu.memory_space<vmem>>, vector<1x128xf32>
    %27 = vector.broadcast %26 : vector<1x128xf32> to vector<32x128xf32>
    %28 = arith.mulf %25, %27 : vector<32x128xf32>
    %c0_13 = arith.constant 0 : index
    %c0_14 = arith.constant 0 : index
    %29 = vector.load %arg5[%c0_13, %c0_14] : memref<1x128xf32, #tpu.memory_space<vmem>>, vector<1x128xf32>
    %30 = vector.broadcast %29 : vector<1x128xf32> to vector<32x128xf32>
    %31 = arith.addf %28, %30 : vector<32x128xf32>
    %cst_15 = arith.constant 0.000000e+00 : f32
    %32 = vector.broadcast %cst_15 : f32 to vector<32x128xf32>
    %33 = arith.maximumf %31, %32 : vector<32x128xf32>
    %34 = tpu.iota {dimensions = array<i32: 0>} : vector<32x128xi32>
    %c15_i32_16 = arith.constant 15 : i32
    %35 = vector.broadcast %c15_i32_16 : i32 to vector<32x128xi32>
    %36 = arith.andi %34, %35 : vector<32x128xi32>
    %c0_i32_17 = arith.constant 0 : i32
    %37 = vector.broadcast %c0_i32_17 : i32 to vector<32x128xi32>
    %38 = arith.cmpi ne, %36, %37 : vector<32x128xi32>
    %c1_i32_18 = arith.constant 1 : i32
    %39 = tpu.dynamic_rotate %33 by %c1_i32_18 dim 0 : vector<32x128xf32>, i32 -> vector<32x128xf32>
    %cst_19 = arith.constant 0.000000e+00 : f32
    %40 = vector.broadcast %cst_19 : f32 to vector<32x128xf32>
    %41 = arith.select %38, %39, %40 : vector<32x128xi1>, vector<32x128xf32>
    %c15_i32_20 = arith.constant 15 : i32
    %42 = vector.broadcast %c15_i32_20 : i32 to vector<32x128xi32>
    %43 = arith.cmpi ne, %36, %42 : vector<32x128xi32>
    %c31_i32_21 = arith.constant 31 : i32
    %44 = tpu.dynamic_rotate %33 by %c31_i32_21 dim 0 : vector<32x128xf32>, i32 -> vector<32x128xf32>
    %cst_22 = arith.constant 0.000000e+00 : f32
    %45 = vector.broadcast %cst_22 : f32 to vector<32x128xf32>
    %46 = arith.select %43, %44, %45 : vector<32x128xi1>, vector<32x128xf32>
    %47 = tpu.concatenate %41, %33, %46 in 1 : vector<32x128xf32>, vector<32x128xf32>, vector<32x128xf32> -> vector<32x384xf32>
    %c0_23 = arith.constant 0 : index
    %c0_24 = arith.constant 0 : index
    %48 = vector.load %arg6[%c0_23, %c0_24] : memref<384x128xf32, #tpu.memory_space<vmem>>, vector<384x128xf32>
    %cst_25 = arith.constant dense<0.000000e+00> : vector<32x128xf32>
    %49 = tpu.matmul %47, %48, %cst_25 {dimension_numbers = #tpu.dot_dimension_numbers<[1], [0], [0], [1], [0, 0, 1, 1], [], []>} : vector<32x384xf32>, vector<384x128xf32>, vector<32x128xf32> -> vector<32x128xf32>
    %c0_26 = arith.constant 0 : index
    %c0_27 = arith.constant 0 : index
    %50 = vector.load %arg7[%c0_26, %c0_27] : memref<1x128xf32, #tpu.memory_space<vmem>>, vector<1x128xf32>
    %51 = vector.broadcast %50 : vector<1x128xf32> to vector<32x128xf32>
    %52 = arith.mulf %49, %51 : vector<32x128xf32>
    %c0_28 = arith.constant 0 : index
    %c0_29 = arith.constant 0 : index
    %53 = vector.load %arg8[%c0_28, %c0_29] : memref<1x128xf32, #tpu.memory_space<vmem>>, vector<1x128xf32>
    %54 = vector.broadcast %53 : vector<1x128xf32> to vector<32x128xf32>
    %55 = arith.addf %52, %54 : vector<32x128xf32>
    %cst_30 = arith.constant 0.000000e+00 : f32
    %56 = vector.broadcast %cst_30 : f32 to vector<32x128xf32>
    %57 = arith.maximumf %55, %56 : vector<32x128xf32>
    %58 = tpu.iota {dimensions = array<i32: 0>} : vector<32x128xi32>
    %c15_i32_31 = arith.constant 15 : i32
    %59 = vector.broadcast %c15_i32_31 : i32 to vector<32x128xi32>
    %60 = arith.andi %58, %59 : vector<32x128xi32>
    %c0_i32_32 = arith.constant 0 : i32
    %61 = vector.broadcast %c0_i32_32 : i32 to vector<32x128xi32>
    %62 = arith.cmpi ne, %60, %61 : vector<32x128xi32>
    %c1_i32_33 = arith.constant 1 : i32
    %63 = tpu.dynamic_rotate %57 by %c1_i32_33 dim 0 : vector<32x128xf32>, i32 -> vector<32x128xf32>
    %cst_34 = arith.constant 0.000000e+00 : f32
    %64 = vector.broadcast %cst_34 : f32 to vector<32x128xf32>
    %65 = arith.select %62, %63, %64 : vector<32x128xi1>, vector<32x128xf32>
    %c15_i32_35 = arith.constant 15 : i32
    %66 = vector.broadcast %c15_i32_35 : i32 to vector<32x128xi32>
    %67 = arith.cmpi ne, %60, %66 : vector<32x128xi32>
    %c31_i32_36 = arith.constant 31 : i32
    %68 = tpu.dynamic_rotate %57 by %c31_i32_36 dim 0 : vector<32x128xf32>, i32 -> vector<32x128xf32>
    %cst_37 = arith.constant 0.000000e+00 : f32
    %69 = vector.broadcast %cst_37 : f32 to vector<32x128xf32>
    %70 = arith.select %67, %68, %69 : vector<32x128xi1>, vector<32x128xf32>
    %71 = tpu.concatenate %65, %57, %70 in 1 : vector<32x128xf32>, vector<32x128xf32>, vector<32x128xf32> -> vector<32x384xf32>
    %c0_38 = arith.constant 0 : index
    %c0_39 = arith.constant 0 : index
    %72 = vector.load %arg9[%c0_38, %c0_39] : memref<384x128xf32, #tpu.memory_space<vmem>>, vector<384x128xf32>
    %cst_40 = arith.constant dense<0.000000e+00> : vector<32x128xf32>
    %73 = tpu.matmul %71, %72, %cst_40 {dimension_numbers = #tpu.dot_dimension_numbers<[1], [0], [0], [1], [0, 0, 1, 1], [], []>} : vector<32x384xf32>, vector<384x128xf32>, vector<32x128xf32> -> vector<32x128xf32>
    %c0_41 = arith.constant 0 : index
    %c0_42 = arith.constant 0 : index
    %74 = vector.load %arg10[%c0_41, %c0_42] : memref<1x128xf32, #tpu.memory_space<vmem>>, vector<1x128xf32>
    %75 = vector.broadcast %74 : vector<1x128xf32> to vector<32x128xf32>
    %76 = arith.mulf %73, %75 : vector<32x128xf32>
    %c0_43 = arith.constant 0 : index
    %c0_44 = arith.constant 0 : index
    %77 = vector.load %arg11[%c0_43, %c0_44] : memref<1x128xf32, #tpu.memory_space<vmem>>, vector<1x128xf32>
    %78 = vector.broadcast %77 : vector<1x128xf32> to vector<32x128xf32>
    %79 = arith.addf %76, %78 : vector<32x128xf32>
    %cst_45 = arith.constant 0.000000e+00 : f32
    %80 = vector.broadcast %cst_45 : f32 to vector<32x128xf32>
    %81 = arith.maximumf %79, %80 : vector<32x128xf32>
    %c0_46 = arith.constant 0 : index
    %c0_47 = arith.constant 0 : index
    %82 = vector.load %arg12[%c0_46, %c0_47] : memref<32x128xf32, #tpu.memory_space<vmem>>, vector<32x128xf32>
    tpu.vector_store %arg12[%c0_46, %c0_47], %81 {strides = array<i32>} : memref<32x128xf32, #tpu.memory_space<vmem>>, vector<32x128xf32>,
    return
  }
  func.func @transform_0(%arg0: i32) -> (i32, i32) {
    %c0_i32 = arith.constant 0 : i32
    %c0_i32_0 = arith.constant 0 : i32
    return %arg0, %c0_i32 : i32, i32
  }
  func.func @transform_1(%arg0: i32) -> (i32, i32) {
    %c0_i32 = arith.constant 0 : i32
    %c0_i32_0 = arith.constant 0 : i32
    return %arg0, %c0_i32 : i32, i32
  }
  func.func @transform_2(%arg0: i32) -> (i32, i32) {
    %c0_i32 = arith.constant 0 : i32
    %c0_i32_0 = arith.constant 0 : i32
    %c0_i32_1 = arith.constant 0 : i32
    return %c0_i32, %c0_i32_0 : i32, i32
  }
  func.func @transform_3(%arg0: i32) -> (i32, i32) {
    %c0_i32 = arith.constant 0 : i32
    %c0_i32_0 = arith.constant 0 : i32
    %c0_i32_1 = arith.constant 0 : i32
    return %c0_i32, %c0_i32_0 : i32, i32
  }
  func.func @transform_4(%arg0: i32) -> (i32, i32) {
    %c0_i32 = arith.constant 0 : i32
    %c0_i32_0 = arith.constant 0 : i32
    %c0_i32_1 = arith.constant 0 : i32
    return %c0_i32, %c0_i32_0 : i32, i32
  }
  func.func @transform_5(%arg0: i32) -> (i32, i32) {
    %c0_i32 = arith.constant 0 : i32
    %c0_i32_0 = arith.constant 0 : i32
    %c0_i32_1 = arith.constant 0 : i32
    return %c0_i32, %c0_i32_0 : i32, i32
  }
  func.func @transform_6(%arg0: i32) -> (i32, i32) {
    %c0_i32 = arith.constant 0 : i32
    %c0_i32_0 = arith.constant 0 : i32
    %c0_i32_1 = arith.constant 0 : i32
    return %c0_i32, %c0_i32_0 : i32, i32
  }
  func.func @transform_7(%arg0: i32) -> (i32, i32) {
    %c0_i32 = arith.constant 0 : i32
    %c0_i32_0 = arith.constant 0 : i32
    %c0_i32_1 = arith.constant 0 : i32
    return %c0_i32, %c0_i32_0 : i32, i32
  }
  func.func @transform_8(%arg0: i32) -> (i32, i32) {
    %c0_i32 = arith.constant 0 : i32
    %c0_i32_0 = arith.constant 0 : i32
    %c0_i32_1 = arith.constant 0 : i32
    return %c0_i32, %c0_i32_0 : i32, i32
  }
  func.func @transform_9(%arg0: i32) -> (i32, i32) {
    %c0_i32 = arith.constant 0 : i32
    %c0_i32_0 = arith.constant 0 : i32
    %c0_i32_1 = arith.constant 0 : i32
    return %c0_i32, %c0_i32_0 : i32, i32
  }
  func.func @transform_10(%arg0: i32) -> (i32, i32) {
    %c0_i32 = arith.constant 0 : i32
    %c0_i32_0 = arith.constant 0 : i32
    %c0_i32_1 = arith.constant 0 : i32
    return %c0_i32, %c0_i32_0 : i32, i32
  }
  func.func @transform_11(%arg0: i32) -> (i32, i32) {
    %c0_i32 = arith.constant 0 : i32
    %c0_i32_0 = arith.constant 0 : i32
    return %arg0, %c0_i32 : i32, i32
  }
}

</mosaic_0001>

<llo_original>
// kernel: decoder_forward.1
$region0: #{decoder_forward.1}
  #allocation0 [shape = 'u32[]', space=smem, size = 0x4, offset = 0x4, fixed_abs, tag = 'smem constant byte address 0x4 - core index']
  #allocation1 [shape = 'u32[144,128]{1,0:T(1,128)}', space=vmem, size = 0x12000, scoped, tag = 'internal scratch']
  %s0 = inlined_call_operand.vmem [shape: f32[32,64], index: 0, kind: input, shape index: {}]
  %s1 = inlined_call_operand.vmem [shape: f32[32,64], index: 1, kind: input, shape index: {}]
  %s2 = inlined_call_operand.vmem [shape: f32[192,128], index: 2, kind: input, shape index: {}]
  %s3 = inlined_call_operand.vmem [shape: f32[1,128], index: 3, kind: input, shape index: {}]
  %s4 = inlined_call_operand.vmem [shape: f32[1,128], index: 4, kind: input, shape index: {}]
  %s5 = inlined_call_operand.vmem [shape: f32[384,128], index: 5, kind: input, shape index: {}]
  %s6 = inlined_call_operand.vmem [shape: f32[1,128], index: 6, kind: input, shape index: {}]
  %s7 = inlined_call_operand.vmem [shape: f32[1,128], index: 7, kind: input, shape index: {}]
  %s8 = inlined_call_operand.vmem [shape: f32[384,128], index: 8, kind: input, shape index: {}]
  %s9 = inlined_call_operand.vmem [shape: f32[1,128], index: 9, kind: input, shape index: {}]
  %s10 = inlined_call_operand.vmem [shape: f32[1,128], index: 10, kind: input, shape index: {}]
  %s11 = inlined_call_operand.vmem [shape: f32[32,128], index: 11, kind: output, shape index: {}]
  %s12 = sld [smem:[#allocation0]]
  $region54: #{decoder_forward.1} parent=0
    _
  %s14 = ssub.s32 1, %s12
  %s15 = scalar_select 0, %s14, %s12
  // Predicated region
  $region2: #{decoder_forward.1} parent=0 // pred_check
    _
  $region3: #{decoder_forward.1} parent=0 // pred_check_branch
    %17 = sbr.rel (0) target = $region5
  $region4: #{decoder_forward.1} parent=0 // pred_region
    _
  $region5: #{decoder_forward.1} parent=0 // pred_fallthru
    _
  // Predicated region
  $region6: #{decoder_forward.1} parent=0 // pred_check
    _
  $region7: #{decoder_forward.1} parent=0 // pred_check_branch
    %19 = sbr.rel (0) target = $region9
  $region8: #{decoder_forward.1} parent=0 // pred_region
    _
  $region9: #{decoder_forward.1} parent=0 // pred_fallthru
    _
  // Predicated region
  $region10: #{decoder_forward.1} parent=0 // pred_check
    _
  $region11: #{decoder_forward.1} parent=0 // pred_check_branch
    %21 = sbr.rel (0) target = $region13
  $region12: #{decoder_forward.1} parent=0 // pred_region
    _
  $region13: #{decoder_forward.1} parent=0 // pred_fallthru
    _
  // Predicated region
  $region14: #{decoder_forward.1} parent=0 // pred_check
    _
  $region15: #{decoder_forward.1} parent=0 // pred_check_branch
    %23 = sbr.rel (0) target = $region17
  $region16: #{decoder_forward.1} parent=0 // pred_region
    _
  $region17: #{decoder_forward.1} parent=0 // pred_fallthru
    _
  // Predicated region
  $region18: #{decoder_forward.1} parent=0 // pred_check
    _
  $region19: #{decoder_forward.1} parent=0 // pred_check_branch
    %25 = sbr.rel (0) target = $region21
  $region20: #{decoder_forward.1} parent=0 // pred_region
    _
  $region21: #{decoder_forward.1} parent=0 // pred_fallthru
    _
  // Predicated region
  $region22: #{decoder_forward.1} parent=0 // pred_check
    _
  $region23: #{decoder_forward.1} parent=0 // pred_check_branch
    %27 = sbr.rel (0) target = $region25
  $region24: #{decoder_forward.1} parent=0 // pred_region
    _
  $region25: #{decoder_forward.1} parent=0 // pred_fallthru
    _
  // Predicated region
  $region26: #{decoder_forward.1} parent=0 // pred_check
    _
  $region27: #{decoder_forward.1} parent=0 // pred_check_branch
    %29 = sbr.rel (0) target = $region29
  $region28: #{decoder_forward.1} parent=0 // pred_region
    _
  $region29: #{decoder_forward.1} parent=0 // pred_fallthru
    _
  // Predicated region
  $region30: #{decoder_forward.1} parent=0 // pred_check
    _
  $region31: #{decoder_forward.1} parent=0 // pred_check_branch
    %31 = sbr.rel (0) target = $region33
  $region32: #{decoder_forward.1} parent=0 // pred_region
    _
  $region33: #{decoder_forward.1} parent=0 // pred_fallthru
    _
  // Predicated region
  $region34: #{decoder_forward.1} parent=0 // pred_check
    _
  $region35: #{decoder_forward.1} parent=0 // pred_check_branch
    %33 = sbr.rel (0) target = $region37
  $region36: #{decoder_forward.1} parent=0 // pred_region
    _
  $region37: #{decoder_forward.1} parent=0 // pred_fallthru
    _
  // Predicated region
  $region38: #{decoder_forward.1} parent=0 // pred_check
    _
  $region39: #{decoder_forward.1} parent=0 // pred_check_branch
    %35 = sbr.rel (0) target = $region41
  $region40: #{decoder_forward.1} parent=0 // pred_region
    _
  $region41: #{decoder_forward.1} parent=0 // pred_fallthru
    _
  // Predicated region
  $region42: #{decoder_forward.1} parent=0 // pred_check
    _
  $region43: #{decoder_forward.1} parent=0 // pred_check_branch
    %37 = sbr.rel (0) target = $region45
  $region44: #{decoder_forward.1} parent=0 // pred_region
    _
  $region45: #{decoder_forward.1} parent=0 // pred_fallthru
    _
  %v38 = vld [vmem:[%s1] sm:$0xff]
  %v39 = vld [vmem:[%s1 + $0x8] sm:$0xff]
  %v40 = vld [vmem:[%s1 + $0x10] sm:$0xff]
  %v41 = vld [vmem:[%s1 + $0x18] sm:$0xff]
  %v42 = vld [vmem:[%s0] sm:$0xff]
  %v43 = vld [vmem:[%s0 + $0x8] sm:$0xff]
  %v44 = vld [vmem:[%s0 + $0x10] sm:$0xff]
  %v45 = vld [vmem:[%s0 + $0x18] sm:$0xff]
  %v46 = vmul.f32 %v38, 0.5
  %v47 = vmul.f32 %v39, 0.5
  %v48 = vmul.f32 %v40, 0.5
  %v49 = vmul.f32 %v41, 0.5
  %v50 = vtanh.pop %v46
  %v51 = vtanh.pop %v47
  %v52 = vtanh.pop %v48
  %v53 = vtanh.pop %v49
  %v54 = vmul.f32 %v50, 0.5
  %v55 = vmul.f32 %v51, 0.5
  %v56 = vmul.f32 %v52, 0.5
  %v57 = vmul.f32 %v53, 0.5
  %v58 = vadd.f32 %v54, 0.5
  %v59 = vadd.f32 %v55, 0.5
  %v60 = vadd.f32 %v56, 0.5
  %v61 = vadd.f32 %v57, 0.5
  %v62 = vmul.f32 %v42, %v58
  %v63 = vmul.f32 %v43, %v59
  %v64 = vmul.f32 %v44, %v60
  %v65 = vmul.f32 %v45, %v61
  %v66 = vlaneseq
  %v67 = vshrl.u32 %v66, 7
  %v68 = vadd.s32 %v67, 8
  %v69 = vadd.s32 %v67, 16
  %v70 = vadd.s32 %v67, 24
  %v71 = vand.u32 %v67, 15
  %v72 = vand.u32 %v68, 15
  %v73 = vand.u32 %v69, 15
  %v74 = vand.u32 %v70, 15
  %vm75 = vcmp.ne.s32.totalorder %v71, 0
  %vm76 = vcmp.ne.s32.totalorder %v72, 0
  %vm77 = vcmp.ne.s32.totalorder %v73, 0
  %vm78 = vcmp.ne.s32.totalorder %v74, 0
  %v79 = vrot.slane %v62, 7
  %v80 = vrot.slane %v63, 7
  %v81 = vrot.slane %v64, 7
  %v82 = vrot.slane %v65, 7
  %vm83 = vcmp.lt.s32.totalorder %v67, 1
  %v84 = vsel %vm83, %v81, %v82
  %v85 = vsel %vm83, %v80, %v81
  %v86 = vsel %vm83, %v79, %v80
  %v87 = vsel %vm83, %v82, %v79
  %v88 = vsel %vm75, %v87, 0.0
  %v89 = vsel %vm76, %v86, 0.0
  %v90 = vsel %vm77, %v85, 0.0
  %v91 = vsel %vm78, %v84, 0.0
  %vm92 = vcmp.ne.s32.totalorder %v71, 15
  %vm93 = vcmp.ne.s32.totalorder %v72, 15
  %vm94 = vcmp.ne.s32.totalorder %v73, 15
  %vm95 = vcmp.ne.s32.totalorder %v74, 15
  %v96 = vrot.slane %v62, 1
  %v97 = vrot.slane %v63, 1
  %v98 = vrot.slane %v64, 1
  %v99 = vrot.slane %v65, 1
  %vm100 = vcmp.lt.s32.totalorder %v67, 7
  %v101 = vsel %vm100, %v98, %v99
  %v102 = vsel %vm100, %v97, %v98
  %v103 = vsel %vm100, %v96, %v97
  %v104 = vsel %vm100, %v99, %v96
  %v105 = vsel %vm92, %v103, 0.0
  %v106 = vsel %vm93, %v102, 0.0
  %v107 = vsel %vm94, %v101, 0.0
  %v108 = vsel %vm95, %v104, 0.0
  %113 = vrot.lane.b32.xlu0 %v62, 64
  %v114 = vpop.permute.xlu0 %113
  %115 = vrot.lane.b32.xlu0 %v63, 64
  %v116 = vpop.permute.xlu0 %115
  %117 = vrot.lane.b32.xlu0 %v64, 64
  %v118 = vpop.permute.xlu0 %117
  %119 = vrot.lane.b32.xlu0 %v65, 64
  %v120 = vpop.permute.xlu0 %119
  %vm125 = vcmask 523264
  %v126 = vsel %vm125, %v88, %v114
  %v127 = vsel %vm125, %v89, %v116
  %v128 = vsel %vm125, %v90, %v118
  %v129 = vsel %vm125, %v91, %v120
  %v130 = vld [vmem:[%s2] sm:$0xff]
  %v131 = vld [vmem:[%s2 + $0x8] sm:$0xff]
  %v132 = vld [vmem:[%s2 + $0x10] sm:$0xff]
  %v133 = vld [vmem:[%s2 + $0x18] sm:$0xff]
  %v134 = vld [vmem:[%s2 + $0x20] sm:$0xff]
  %v135 = vld [vmem:[%s2 + $0x28] sm:$0xff]
  %v136 = vld [vmem:[%s2 + $0x30] sm:$0xff]
  %v137 = vld [vmem:[%s2 + $0x38] sm:$0xff]
  %v138 = vld [vmem:[%s2 + $0x40] sm:$0xff]
  %v139 = vld [vmem:[%s2 + $0x48] sm:$0xff]
  %v140 = vld [vmem:[%s2 + $0x50] sm:$0xff]
  %v141 = vld [vmem:[%s2 + $0x58] sm:$0xff]
  %v142 = vld [vmem:[%s2 + $0x60] sm:$0xff]
  %v143 = vld [vmem:[%s2 + $0x68] sm:$0xff]
  %v144 = vld [vmem:[%s2 + $0x70] sm:$0xff]
  %v145 = vld [vmem:[%s2 + $0x78] sm:$0xff]
  %v146 = vld [vmem:[%s2 + $0x80] sm:$0xff]
  %v147 = vld [vmem:[%s2 + $0x88] sm:$0xff]
  %v148 = vld [vmem:[%s2 + $0x90] sm:$0xff]
  %v149 = vld [vmem:[%s2 + $0x98] sm:$0xff]
  %v150 = vld [vmem:[%s2 + $0xa0] sm:$0xff]
  %v151 = vld [vmem:[%s2 + $0xa8] sm:$0xff]
  %v152 = vld [vmem:[%s2 + $0xb0] sm:$0xff]
  %v153 = vld [vmem:[%s2 + $0xb8] sm:$0xff]
  %v155 = vsel %vm125, %v105, 0
  %v158 = vsel %vm125, %v106, 0
  %v161 = vsel %vm125, %v107, 0
  %v164 = vsel %vm125, %v108, 0
  %166 = vmatprep.subr.mxu0 0.0
  %167 = vmatpush1.msra.mxu0 %v145
  %168 = vmatprep.subr.mxu0 0.0
  %169 = vmatpush1.msra.mxu0 %v144
  %170 = vmatprep.subr.mxu0 0.0
  %171 = vmatpush1.msra.mxu0 %v143
  %172 = vmatprep.subr.mxu0 0.0
  %173 = vmatpush1.msra.mxu0 %v142
  %174 = vmatprep.subr.mxu0 0.0
  %175 = vmatpush1.msra.mxu0 %v141
  %176 = vmatprep.subr.mxu0 0.0
  %177 = vmatpush1.msra.mxu0 %v140
  %178 = vmatprep.subr.mxu0 0.0
  %179 = vmatpush1.msra.mxu0 %v139
  %180 = vmatprep.subr.mxu0 0.0
  %181 = vmatpush1.msra.mxu0 %v138
  %182 = vmatprep.subr.mxu0 0.0
  %183 = vmatpush1.msra.mxu0 %v137
  %184 = vmatprep.subr.mxu0 0.0
  %185 = vmatpush1.msra.mxu0 %v136
  %186 = vmatprep.subr.mxu0 0.0
  %187 = vmatpush1.msra.mxu0 %v135
  %188 = vmatprep.subr.mxu0 0.0
  %189 = vmatpush1.msra.mxu0 %v134
  %190 = vmatprep.subr.mxu0 0.0
  %191 = vmatpush1.msra.mxu0 %v133
  %192 = vmatprep.subr.mxu0 0.0
  %193 = vmatpush1.msra.mxu0 %v132
  %194 = vmatprep.subr.mxu0 0.0
  %195 = vmatpush1.msra.mxu0 %v131
  %196 = vmatprep.subr.mxu0 0.0
  %197 = vmatpush1.msra.mxu0 %v130
  %198 = vmatprep.subr.mxu0 0.0
  %199 = vmatpush2.msra.mxu0 0.0
  %200 = vmatprep.subr.mxu0 0.0
  %201 = vmatpush2.msra.mxu0 0.0
  %202 = vmatprep.subr.mxu0 0.0
  %203 = vmatpush2.msra.mxu0 0.0
  %204 = vmatprep.subr.mxu0 0.0
  %205 = vmatpush2.msra.mxu0 0.0
  %206 = vmatprep.subr.mxu0 0.0
  %207 = vmatpush2.msra.mxu0 0.0
  %208 = vmatprep.subr.mxu0 0.0
  %209 = vmatpush2.msra.mxu0 0.0
  %210 = vmatprep.subr.mxu0 0.0
  %211 = vmatpush2.msra.mxu0 0.0
  %212 = vmatprep.subr.mxu0 0.0
  %213 = vmatpush2.msra.mxu0 0.0
  %214 = vmatprep.subr.mxu0 0.0
  %215 = vmatpush2.msra.mxu0 %v153
  %216 = vmatprep.subr.mxu0 0.0
  %217 = vmatpush2.msra.mxu0 %v152
  %218 = vmatprep.subr.mxu0 0.0
  %219 = vmatpush2.msra.mxu0 %v151
  %220 = vmatprep.subr.mxu0 0.0
  %221 = vmatpush2.msra.mxu0 %v150
  %222 = vmatprep.subr.mxu0 0.0
  %223 = vmatpush2.msra.mxu0 %v149
  %224 = vmatprep.subr.mxu0 0.0
  %225 = vmatpush2.msra.mxu0 %v148
  %226 = vmatprep.subr.mxu0 0.0
  %227 = vmatpush2.msra.mxu0 %v147
  %228 = vmatprep.subr.mxu0 0.0
  %229 = vmatpush2.msra.mxu0 %v146
  %230 = vmatprep.mubr.f32.mxu0 %v155
  %231 = vmatmul.mubr.f32.gmra.mxu0 %v126
  %v232 = vpop.f32.mrf.mxu0
  %v233 = vadd.f32 0.0, %v232
  %v234 = vpop.f32.mrf.mxu0
  %235 = vmatprep.mubr.f32.mxu0 %v158
  %236 = vmatmul.mubr.f32.gmra.mxu0 %v127
  %v237 = vpop.f32.mrf.mxu0
  %v238 = vadd.f32 0.0, %v237
  %v239 = vpop.f32.mrf.mxu0
  %240 = vmatprep.mubr.f32.mxu0 %v161
  %241 = vmatmul.mubr.f32.gmra.mxu0 %v128
  %v242 = vpop.f32.mrf.mxu0
  %v243 = vadd.f32 0.0, %v242
  %v244 = vpop.f32.mrf.mxu0
  %245 = vmatprep.mubr.f32.mxu0 %v164
  %246 = vmatmul.mubr.f32.gmra.mxu0 %v129
  %v247 = vpop.f32.mrf.mxu0
  %v248 = vadd.f32 0.0, %v247
  %v249 = vpop.f32.mrf.mxu0
  %250 = vdwg.mxu0
  %v251 = vld [vmem:[%s3] sm:$0x1]
  %v253 = vlaneseq
  %v254 = vshrl.u32 %v253, 7
  %v255 = vsub.s32 0, %v254
  %v256 = vrot.slane %v251, %v255
  %v258 = vmul.f32 %v233, %v256
  %v259 = vmul.f32 %v238, %v256
  %v260 = vmul.f32 %v243, %v256
  %v261 = vmul.f32 %v248, %v256
  %v262 = vld [vmem:[%s4] sm:$0x1]
  %v264 = vlaneseq
  %v265 = vshrl.u32 %v264, 7
  %v266 = vsub.s32 0, %v265
  %v267 = vrot.slane %v262, %v266
  %v269 = vadd.f32 %v258, %v267
  %v270 = vadd.f32 %v259, %v267
  %v271 = vadd.f32 %v260, %v267
  %v272 = vadd.f32 %v261, %v267
  %v273 = vmax.f32 %v269, 0.0
  %v274 = vmax.f32 %v270, 0.0
  %v275 = vmax.f32 %v271, 0.0
  %v276 = vmax.f32 %v272, 0.0
  %v277 = vrot.slane %v273, 7
  %v278 = vrot.slane %v274, 7
  %v279 = vrot.slane %v275, 7
  %v280 = vrot.slane %v276, 7
  %v281 = vsel %vm83, %v279, %v280
  %v282 = vsel %vm83, %v278, %v279
  %v283 = vsel %vm83, %v277, %v278
  %v284 = vsel %vm83, %v280, %v277
  %v285 = vsel %vm75, %v284, 0.0
  %v286 = vsel %vm76, %v283, 0.0
  %v287 = vsel %vm77, %v282, 0.0
  %v288 = vsel %vm78, %v281, 0.0
  %v289 = vrot.slane %v273, 1
  %v290 = vrot.slane %v274, 1
  %v291 = vrot.slane %v275, 1
  %v292 = vrot.slane %v276, 1
  %v293 = vsel %vm100, %v291, %v292
  %v294 = vsel %vm100, %v290, %v291
  %v295 = vsel %vm100, %v289, %v290
  %v296 = vsel %vm100, %v292, %v289
  %v297 = vsel %vm92, %v295, 0.0
  %v298 = vsel %vm93, %v294, 0.0
  %v299 = vsel %vm94, %v293, 0.0
  %v300 = vsel %vm95, %v296, 0.0
  %v301 = vld [vmem:[%s5] sm:$0xff]
  %v302 = vld [vmem:[%s5 + $0x8] sm:$0xff]
  %v303 = vld [vmem:[%s5 + $0x10] sm:$0xff]
  %v304 = vld [vmem:[%s5 + $0x18] sm:$0xff]
  %v305 = vld [vmem:[%s5 + $0x20] sm:$0xff]
  %v306 = vld [vmem:[%s5 + $0x28] sm:$0xff]
  %v307 = vld [vmem:[%s5 + $0x30] sm:$0xff]
  %v308 = vld [vmem:[%s5 + $0x38] sm:$0xff]
  %v309 = vld [vmem:[%s5 + $0x40] sm:$0xff]
  %v310 = vld [vmem:[%s5 + $0x48] sm:$0xff]
  %v311 = vld [vmem:[%s5 + $0x50] sm:$0xff]
  %v312 = vld [vmem:[%s5 + $0x58] sm:$0xff]
  %v313 = vld [vmem:[%s5 + $0x60] sm:$0xff]
  %v314 = vld [vmem:[%s5 + $0x68] sm:$0xff]
  %v315 = vld [vmem:[%s5 + $0x70] sm:$0xff]
  %v316 = vld [vmem:[%s5 + $0x78] sm:$0xff]
  %v317 = vld [vmem:[%s5 + $0x80] sm:$0xff]
  %v318 = vld [vmem:[%s5 + $0x88] sm:$0xff]
  %v319 = vld [vmem:[%s5 + $0x90] sm:$0xff]
  %v320 = vld [vmem:[%s5 + $0x98] sm:$0xff]
  %v321 = vld [vmem:[%s5 + $0xa0] sm:$0xff]
  %v322 = vld [vmem:[%s5 + $0xa8] sm:$0xff]
  %v323 = vld [vmem:[%s5 + $0xb0] sm:$0xff]
  %v324 = vld [vmem:[%s5 + $0xb8] sm:$0xff]
  %v325 = vld [vmem:[%s5 + $0xc0] sm:$0xff]
  %v326 = vld [vmem:[%s5 + $0xc8] sm:$0xff]
  %v327 = vld [vmem:[%s5 + $0xd0] sm:$0xff]
  %v328 = vld [vmem:[%s5 + $0xd8] sm:$0xff]
  %v329 = vld [vmem:[%s5 + $0xe0] sm:$0xff]
  %v330 = vld [vmem:[%s5 + $0xe8] sm:$0xff]
  %v331 = vld [vmem:[%s5 + $0xf0] sm:$0xff]
  %v332 = vld [vmem:[%s5 + $0xf8] sm:$0xff]
  %v333 = vld [vmem:[%s5 + $0x100] sm:$0xff]
  %v334 = vld [vmem:[%s5 + $0x108] sm:$0xff]
  %v335 = vld [vmem:[%s5 + $0x110] sm:$0xff]
  %v336 = vld [vmem:[%s5 + $0x118] sm:$0xff]
  %v337 = vld [vmem:[%s5 + $0x120] sm:$0xff]
  %v338 = vld [vmem:[%s5 + $0x128] sm:$0xff]
  %v339 = vld [vmem:[%s5 + $0x130] sm:$0xff]
  %v340 = vld [vmem:[%s5 + $0x138] sm:$0xff]
  %v341 = vld [vmem:[%s5 + $0x140] sm:$0xff]
  %v342 = vld [vmem:[%s5 + $0x148] sm:$0xff]
  %v343 = vld [vmem:[%s5 + $0x150] sm:$0xff]
  %v344 = vld [vmem:[%s5 + $0x158] sm:$0xff]
  %v345 = vld [vmem:[%s5 + $0x160] sm:$0xff]
  %v346 = vld [vmem:[%s5 + $0x168] sm:$0xff]
  %v347 = vld [vmem:[%s5 + $0x170] sm:$0xff]
  %v348 = vld [vmem:[%s5 + $0x178] sm:$0xff]
  %349 = vmatprep.subr.mxu0 0.0
  %350 = vmatpush1.msra.mxu0 %v316
  %351 = vmatprep.subr.mxu0 0.0
  %352 = vmatpush1.msra.mxu0 %v315
  %353 = vmatprep.subr.mxu0 0.0
  %354 = vmatpush1.msra.mxu0 %v314
  %355 = vmatprep.subr.mxu0 0.0
  %356 = vmatpush1.msra.mxu0 %v313
  %357 = vmatprep.subr.mxu0 0.0
  %358 = vmatpush1.msra.mxu0 %v312
  %359 = vmatprep.subr.mxu0 0.0
  %360 = vmatpush1.msra.mxu0 %v311
  %361 = vmatprep.subr.mxu0 0.0
  %362 = vmatpush1.msra.mxu0 %v310
  %363 = vmatprep.subr.mxu0 0.0
  %364 = vmatpush1.msra.mxu0 %v309
  %365 = vmatprep.subr.mxu0 0.0
  %366 = vmatpush1.msra.mxu0 %v308
  %367 = vmatprep.subr.mxu0 0.0
  %368 = vmatpush1.msra.mxu0 %v307
  %369 = vmatprep.subr.mxu0 0.0
  %370 = vmatpush1.msra.mxu0 %v306
  %371 = vmatprep.subr.mxu0 0.0
  %372 = vmatpush1.msra.mxu0 %v305
  %373 = vmatprep.subr.mxu0 0.0
  %374 = vmatpush1.msra.mxu0 %v304
  %375 = vmatprep.subr.mxu0 0.0
  %376 = vmatpush1.msra.mxu0 %v303
  %377 = vmatprep.subr.mxu0 0.0
  %378 = vmatpush1.msra.mxu0 %v302
  %379 = vmatprep.subr.mxu0 0.0
  %380 = vmatpush1.msra.mxu0 %v301
  %381 = vmatprep.subr.mxu0 0.0
  %382 = vmatpush2.msra.mxu0 %v332
  %383 = vmatprep.subr.mxu0 0.0
  %384 = vmatpush2.msra.mxu0 %v331
  %385 = vmatprep.subr.mxu0 0.0
  %386 = vmatpush2.msra.mxu0 %v330
  %387 = vmatprep.subr.mxu0 0.0
  %388 = vmatpush2.msra.mxu0 %v329
  %389 = vmatprep.subr.mxu0 0.0
  %390 = vmatpush2.msra.mxu0 %v328
  %391 = vmatprep.subr.mxu0 0.0
  %392 = vmatpush2.msra.mxu0 %v327
  %393 = vmatprep.subr.mxu0 0.0
  %394 = vmatpush2.msra.mxu0 %v326
  %395 = vmatprep.subr.mxu0 0.0
  %396 = vmatpush2.msra.mxu0 %v325
  %397 = vmatprep.subr.mxu0 0.0
  %398 = vmatpush2.msra.mxu0 %v324
  %399 = vmatprep.subr.mxu0 0.0
  %400 = vmatpush2.msra.mxu0 %v323
  %401 = vmatprep.subr.mxu0 0.0
  %402 = vmatpush2.msra.mxu0 %v322
  %403 = vmatprep.subr.mxu0 0.0
  %404 = vmatpush2.msra.mxu0 %v321
  %405 = vmatprep.subr.mxu0 0.0
  %406 = vmatpush2.msra.mxu0 %v320
  %407 = vmatprep.subr.mxu0 0.0
  %408 = vmatpush2.msra.mxu0 %v319
  %409 = vmatprep.subr.mxu0 0.0
  %410 = vmatpush2.msra.mxu0 %v318
  %411 = vmatprep.subr.mxu0 0.0
  %412 = vmatpush2.msra.mxu0 %v317
  %413 = vmatprep.mubr.f32.mxu0 %v273
  %414 = vmatmul.mubr.f32.gmra.mxu0 %v285
  %v415 = vpop.f32.mrf.mxu0
  %v416 = vadd.f32 0.0, %v415
  %v417 = vpop.f32.mrf.mxu0
  %418 = vmatprep.mubr.f32.mxu0 %v274
  %419 = vmatmul.mubr.f32.gmra.mxu0 %v286
  %v420 = vpop.f32.mrf.mxu0
  %v421 = vadd.f32 0.0, %v420
  %v422 = vpop.f32.mrf.mxu0
  %423 = vmatprep.mubr.f32.mxu0 %v275
  %424 = vmatmul.mubr.f32.gmra.mxu0 %v287
  %v425 = vpop.f32.mrf.mxu0
  %v426 = vadd.f32 0.0, %v425
  %v427 = vpop.f32.mrf.mxu0
  %428 = vmatprep.mubr.f32.mxu0 %v276
  %429 = vmatmul.mubr.f32.gmra.mxu0 %v288
  %v430 = vpop.f32.mrf.mxu0
  %v431 = vadd.f32 0.0, %v430
  %v432 = vpop.f32.mrf.mxu0
  %433 = vdwg.mxu0
  %434 = vmatprep.subr.mxu0 0.0
  %435 = vmatpush1.msra.mxu0 %v348
  %436 = vmatprep.subr.mxu0 0.0
  %437 = vmatpush1.msra.mxu0 %v347
  %438 = vmatprep.subr.mxu0 0.0
  %439 = vmatpush1.msra.mxu0 %v346
  %440 = vmatprep.subr.mxu0 0.0
  %441 = vmatpush1.msra.mxu0 %v345
  %442 = vmatprep.subr.mxu0 0.0
  %443 = vmatpush1.msra.mxu0 %v344
  %444 = vmatprep.subr.mxu0 0.0
  %445 = vmatpush1.msra.mxu0 %v343
  %446 = vmatprep.subr.mxu0 0.0
  %447 = vmatpush1.msra.mxu0 %v342
  %448 = vmatprep.subr.mxu0 0.0
  %449 = vmatpush1.msra.mxu0 %v341
  %450 = vmatprep.subr.mxu0 0.0
  %451 = vmatpush1.msra.mxu0 %v340
  %452 = vmatprep.subr.mxu0 0.0
  %453 = vmatpush1.msra.mxu0 %v339
  %454 = vmatprep.subr.mxu0 0.0
  %455 = vmatpush1.msra.mxu0 %v338
  %456 = vmatprep.subr.mxu0 0.0
  %457 = vmatpush1.msra.mxu0 %v337
  %458 = vmatprep.subr.mxu0 0.0
  %459 = vmatpush1.msra.mxu0 %v336
  %460 = vmatprep.subr.mxu0 0.0
  %461 = vmatpush1.msra.mxu0 %v335
  %462 = vmatprep.subr.mxu0 0.0
  %463 = vmatpush1.msra.mxu0 %v334
  %464 = vmatprep.subr.mxu0 0.0
  %465 = vmatpush1.msra.mxu0 %v333
  %466 = vmatprep.subr.mxu0 0.0
  %467 = vmatpush2.msra.mxu0 0.0
  %468 = vmatprep.subr.mxu0 0.0
  %469 = vmatpush2.msra.mxu0 0.0
  %470 = vmatprep.subr.mxu0 0.0
  %471 = vmatpush2.msra.mxu0 0.0
  %472 = vmatprep.subr.mxu0 0.0
  %473 = vmatpush2.msra.mxu0 0.0
  %474 = vmatprep.subr.mxu0 0.0
  %475 = vmatpush2.msra.mxu0 0.0
  %476 = vmatprep.subr.mxu0 0.0
  %477 = vmatpush2.msra.mxu0 0.0
  %478 = vmatprep.subr.mxu0 0.0
  %479 = vmatpush2.msra.mxu0 0.0
  %480 = vmatprep.subr.mxu0 0.0
  %481 = vmatpush2.msra.mxu0 0.0
  %482 = vmatprep.subr.mxu0 0.0
  %483 = vmatpush2.msra.mxu0 0.0
  %484 = vmatprep.subr.mxu0 0.0
  %485 = vmatpush2.msra.mxu0 0.0
  %486 = vmatprep.subr.mxu0 0.0
  %487 = vmatpush2.msra.mxu0 0.0
  %488 = vmatprep.subr.mxu0 0.0
  %489 = vmatpush2.msra.mxu0 0.0
  %490 = vmatprep.subr.mxu0 0.0
  %491 = vmatpush2.msra.mxu0 0.0
  %492 = vmatprep.subr.mxu0 0.0
  %493 = vmatpush2.msra.mxu0 0.0
  %494 = vmatprep.subr.mxu0 0.0
  %495 = vmatpush2.msra.mxu0 0.0
  %496 = vmatprep.subr.mxu0 0.0
  %497 = vmatpush2.msra.mxu0 0.0
  %498 = vmatprep.mubr.f32.mxu0 0.0
  %499 = vmatmul.mubr.f32.gmra.mxu0 %v297
  %v500 = vpop.f32.mrf.mxu0
  %v501 = vadd.f32 %v416, %v500
  %v502 = vpop.f32.mrf.mxu0
  %503 = vmatprep.mubr.f32.mxu0 0.0
  %504 = vmatmul.mubr.f32.gmra.mxu0 %v298
  %v505 = vpop.f32.mrf.mxu0
  %v506 = vadd.f32 %v421, %v505
  %v507 = vpop.f32.mrf.mxu0
  %508 = vmatprep.mubr.f32.mxu0 0.0
  %509 = vmatmul.mubr.f32.gmra.mxu0 %v299
  %v510 = vpop.f32.mrf.mxu0
  %v511 = vadd.f32 %v426, %v510
  %v512 = vpop.f32.mrf.mxu0
  %513 = vmatprep.mubr.f32.mxu0 0.0
  %514 = vmatmul.mubr.f32.gmra.mxu0 %v300
  %v515 = vpop.f32.mrf.mxu0
  %v516 = vadd.f32 %v431, %v515
  %v517 = vpop.f32.mrf.mxu0
  %518 = vdwg.mxu0
  %v519 = vld [vmem:[%s6] sm:$0x1]
  %v521 = vlaneseq
  %v522 = vshrl.u32 %v521, 7
  %v523 = vsub.s32 0, %v522
  %v524 = vrot.slane %v519, %v523
  %v526 = vmul.f32 %v501, %v524
  %v527 = vmul.f32 %v506, %v524
  %v528 = vmul.f32 %v511, %v524
  %v529 = vmul.f32 %v516, %v524
  %v530 = vld [vmem:[%s7] sm:$0x1]
  %v532 = vlaneseq
  %v533 = vshrl.u32 %v532, 7
  %v534 = vsub.s32 0, %v533
  %v535 = vrot.slane %v530, %v534
  %v537 = vadd.f32 %v526, %v535
  %v538 = vadd.f32 %v527, %v535
  %v539 = vadd.f32 %v528, %v535
  %v540 = vadd.f32 %v529, %v535
  %v541 = vmax.f32 %v537, 0.0
  %v542 = vmax.f32 %v538, 0.0
  %v543 = vmax.f32 %v539, 0.0
  %v544 = vmax.f32 %v540, 0.0
  %v545 = vrot.slane %v541, 7
  %v546 = vrot.slane %v542, 7
  %v547 = vrot.slane %v543, 7
  %v548 = vrot.slane %v544, 7
  %v549 = vsel %vm83, %v547, %v548
  %v550 = vsel %vm83, %v546, %v547
  %v551 = vsel %vm83, %v545, %v546
  %v552 = vsel %vm83, %v548, %v545
  %v553 = vsel %vm75, %v552, 0.0
  %v554 = vsel %vm76, %v551, 0.0
  %v555 = vsel %vm77, %v550, 0.0
  %v556 = vsel %vm78, %v549, 0.0
  %v557 = vrot.slane %v541, 1
  %v558 = vrot.slane %v542, 1
  %v559 = vrot.slane %v543, 1
  %v560 = vrot.slane %v544, 1
  %v561 = vsel %vm100, %v559, %v560
  %v562 = vsel %vm100, %v558, %v559
  %v563 = vsel %vm100, %v557, %v558
  %v564 = vsel %vm100, %v560, %v557
  %v565 = vsel %vm92, %v563, 0.0
  %v566 = vsel %vm93, %v562, 0.0
  %v567 = vsel %vm94, %v561, 0.0
  %v568 = vsel %vm95, %v564, 0.0
  %v569 = vld [vmem:[%s8] sm:$0xff]
  %v570 = vld [vmem:[%s8 + $0x8] sm:$0xff]
  %v571 = vld [vmem:[%s8 + $0x10] sm:$0xff]
  %v572 = vld [vmem:[%s8 + $0x18] sm:$0xff]
  %v573 = vld [vmem:[%s8 + $0x20] sm:$0xff]
  %v574 = vld [vmem:[%s8 + $0x28] sm:$0xff]
  %v575 = vld [vmem:[%s8 + $0x30] sm:$0xff]
  %v576 = vld [vmem:[%s8 + $0x38] sm:$0xff]
  %v577 = vld [vmem:[%s8 + $0x40] sm:$0xff]
  %v578 = vld [vmem:[%s8 + $0x48] sm:$0xff]
  %v579 = vld [vmem:[%s8 + $0x50] sm:$0xff]
  %v580 = vld [vmem:[%s8 + $0x58] sm:$0xff]
  %v581 = vld [vmem:[%s8 + $0x60] sm:$0xff]
  %v582 = vld [vmem:[%s8 + $0x68] sm:$0xff]
  %v583 = vld [vmem:[%s8 + $0x70] sm:$0xff]
  %v584 = vld [vmem:[%s8 + $0x78] sm:$0xff]
  %v585 = vld [vmem:[%s8 + $0x80] sm:$0xff]
  %v586 = vld [vmem:[%s8 + $0x88] sm:$0xff]
  %v587 = vld [vmem:[%s8 + $0x90] sm:$0xff]
  %v588 = vld [vmem:[%s8 + $0x98] sm:$0xff]
  %v589 = vld [vmem:[%s8 + $0xa0] sm:$0xff]
  %v590 = vld [vmem:[%s8 + $0xa8] sm:$0xff]
  %v591 = vld [vmem:[%s8 + $0xb0] sm:$0xff]
  %v592 = vld [vmem:[%s8 + $0xb8] sm:$0xff]
  %v593 = vld [vmem:[%s8 + $0xc0] sm:$0xff]
  %v594 = vld [vmem:[%s8 + $0xc8] sm:$0xff]
  %v595 = vld [vmem:[%s8 + $0xd0] sm:$0xff]
  %v596 = vld [vmem:[%s8 + $0xd8] sm:$0xff]
  %v597 = vld [vmem:[%s8 + $0xe0] sm:$0xff]
  %v598 = vld [vmem:[%s8 + $0xe8] sm:$0xff]
  %v599 = vld [vmem:[%s8 + $0xf0] sm:$0xff]
  %v600 = vld [vmem:[%s8 + $0xf8] sm:$0xff]
  %v601 = vld [vmem:[%s8 + $0x100] sm:$0xff]
  %v602 = vld [vmem:[%s8 + $0x108] sm:$0xff]
  %v603 = vld [vmem:[%s8 + $0x110] sm:$0xff]
  %v604 = vld [vmem:[%s8 + $0x118] sm:$0xff]
  %v605 = vld [vmem:[%s8 + $0x120] sm:$0xff]
  %v606 = vld [vmem:[%s8 + $0x128] sm:$0xff]
  %v607 = vld [vmem:[%s8 + $0x130] sm:$0xff]
  %v608 = vld [vmem:[%s8 + $0x138] sm:$0xff]
  %v609 = vld [vmem:[%s8 + $0x140] sm:$0xff]
  %v610 = vld [vmem:[%s8 + $0x148] sm:$0xff]
  %v611 = vld [vmem:[%s8 + $0x150] sm:$0xff]
  %v612 = vld [vmem:[%s8 + $0x158] sm:$0xff]
  %v613 = vld [vmem:[%s8 + $0x160] sm:$0xff]
  %v614 = vld [vmem:[%s8 + $0x168] sm:$0xff]
  %v615 = vld [vmem:[%s8 + $0x170] sm:$0xff]
  %v616 = vld [vmem:[%s8 + $0x178] sm:$0xff]
  %617 = vmatprep.subr.mxu0 0.0
  %618 = vmatpush1.msra.mxu0 %v584
  %619 = vmatprep.subr.mxu0 0.0
  %620 = vmatpush1.msra.mxu0 %v583
  %621 = vmatprep.subr.mxu0 0.0
  %622 = vmatpush1.msra.mxu0 %v582
  %623 = vmatprep.subr.mxu0 0.0
  %624 = vmatpush1.msra.mxu0 %v581
  %625 = vmatprep.subr.mxu0 0.0
  %626 = vmatpush1.msra.mxu0 %v580
  %627 = vmatprep.subr.mxu0 0.0
  %628 = vmatpush1.msra.mxu0 %v579
  %629 = vmatprep.subr.mxu0 0.0
  %630 = vmatpush1.msra.mxu0 %v578
  %631 = vmatprep.subr.mxu0 0.0
  %632 = vmatpush1.msra.mxu0 %v577
  %633 = vmatprep.subr.mxu0 0.0
  %634 = vmatpush1.msra.mxu0 %v576
  %635 = vmatprep.subr.mxu0 0.0
  %636 = vmatpush1.msra.mxu0 %v575
  %637 = vmatprep.subr.mxu0 0.0
  %638 = vmatpush1.msra.mxu0 %v574
  %639 = vmatprep.subr.mxu0 0.0
  %640 = vmatpush1.msra.mxu0 %v573
  %641 = vmatprep.subr.mxu0 0.0
  %642 = vmatpush1.msra.mxu0 %v572
  %643 = vmatprep.subr.mxu0 0.0
  %644 = vmatpush1.msra.mxu0 %v571
  %645 = vmatprep.subr.mxu0 0.0
  %646 = vmatpush1.msra.mxu0 %v570
  %647 = vmatprep.subr.mxu0 0.0
  %648 = vmatpush1.msra.mxu0 %v569
  %649 = vmatprep.subr.mxu0 0.0
  %650 = vmatpush2.msra.mxu0 %v600
  %651 = vmatprep.subr.mxu0 0.0
  %652 = vmatpush2.msra.mxu0 %v599
  %653 = vmatprep.subr.mxu0 0.0
  %654 = vmatpush2.msra.mxu0 %v598
  %655 = vmatprep.subr.mxu0 0.0
  %656 = vmatpush2.msra.mxu0 %v597
  %657 = vmatprep.subr.mxu0 0.0
  %658 = vmatpush2.msra.mxu0 %v596
  %659 = vmatprep.subr.mxu0 0.0
  %660 = vmatpush2.msra.mxu0 %v595
  %661 = vmatprep.subr.mxu0 0.0
  %662 = vmatpush2.msra.mxu0 %v594
  %663 = vmatprep.subr.mxu0 0.0
  %664 = vmatpush2.msra.mxu0 %v593
  %665 = vmatprep.subr.mxu0 0.0
  %666 = vmatpush2.msra.mxu0 %v592
  %667 = vmatprep.subr.mxu0 0.0
  %668 = vmatpush2.msra.mxu0 %v591
  %669 = vmatprep.subr.mxu0 0.0
  %670 = vmatpush2.msra.mxu0 %v590
  %671 = vmatprep.subr.mxu0 0.0
  %672 = vmatpush2.msra.mxu0 %v589
  %673 = vmatprep.subr.mxu0 0.0
  %674 = vmatpush2.msra.mxu0 %v588
  %675 = vmatprep.subr.mxu0 0.0
  %676 = vmatpush2.msra.mxu0 %v587
  %677 = vmatprep.subr.mxu0 0.0
  %678 = vmatpush2.msra.mxu0 %v586
  %679 = vmatprep.subr.mxu0 0.0
  %680 = vmatpush2.msra.mxu0 %v585
  %681 = vmatprep.mubr.f32.mxu0 %v541
  %682 = vmatmul.mubr.f32.gmra.mxu0 %v553
  %v683 = vpop.f32.mrf.mxu0
  %v684 = vadd.f32 0.0, %v683
  %v685 = vpop.f32.mrf.mxu0
  %686 = vmatprep.mubr.f32.mxu0 %v542
  %687 = vmatmul.mubr.f32.gmra.mxu0 %v554
  %v688 = vpop.f32.mrf.mxu0
  %v689 = vadd.f32 0.0, %v688
  %v690 = vpop.f32.mrf.mxu0
  %691 = vmatprep.mubr.f32.mxu0 %v543
  %692 = vmatmul.mubr.f32.gmra.mxu0 %v555
  %v693 = vpop.f32.mrf.mxu0
  %v694 = vadd.f32 0.0, %v693
  %v695 = vpop.f32.mrf.mxu0
  %696 = vmatprep.mubr.f32.mxu0 %v544
  %697 = vmatmul.mubr.f32.gmra.mxu0 %v556
  %v698 = vpop.f32.mrf.mxu0
  %v699 = vadd.f32 0.0, %v698
  %v700 = vpop.f32.mrf.mxu0
  %701 = vdwg.mxu0
  %702 = vmatprep.subr.mxu0 0.0
  %703 = vmatpush1.msra.mxu0 %v616
  %704 = vmatprep.subr.mxu0 0.0
  %705 = vmatpush1.msra.mxu0 %v615
  %706 = vmatprep.subr.mxu0 0.0
  %707 = vmatpush1.msra.mxu0 %v614
  %708 = vmatprep.subr.mxu0 0.0
  %709 = vmatpush1.msra.mxu0 %v613
  %710 = vmatprep.subr.mxu0 0.0
  %711 = vmatpush1.msra.mxu0 %v612
  %712 = vmatprep.subr.mxu0 0.0
  %713 = vmatpush1.msra.mxu0 %v611
  %714 = vmatprep.subr.mxu0 0.0
  %715 = vmatpush1.msra.mxu0 %v610
  %716 = vmatprep.subr.mxu0 0.0
  %717 = vmatpush1.msra.mxu0 %v609
  %718 = vmatprep.subr.mxu0 0.0
  %719 = vmatpush1.msra.mxu0 %v608
  %720 = vmatprep.subr.mxu0 0.0
  %721 = vmatpush1.msra.mxu0 %v607
  %722 = vmatprep.subr.mxu0 0.0
  %723 = vmatpush1.msra.mxu0 %v606
  %724 = vmatprep.subr.mxu0 0.0
  %725 = vmatpush1.msra.mxu0 %v605
  %726 = vmatprep.subr.mxu0 0.0
  %727 = vmatpush1.msra.mxu0 %v604
  %728 = vmatprep.subr.mxu0 0.0
  %729 = vmatpush1.msra.mxu0 %v603
  %730 = vmatprep.subr.mxu0 0.0
  %731 = vmatpush1.msra.mxu0 %v602
  %732 = vmatprep.subr.mxu0 0.0
  %733 = vmatpush1.msra.mxu0 %v601
  %734 = vmatprep.subr.mxu0 0.0
  %735 = vmatpush2.msra.mxu0 0.0
  %736 = vmatprep.subr.mxu0 0.0
  %737 = vmatpush2.msra.mxu0 0.0
  %738 = vmatprep.subr.mxu0 0.0
  %739 = vmatpush2.msra.mxu0 0.0
  %740 = vmatprep.subr.mxu0 0.0
  %741 = vmatpush2.msra.mxu0 0.0
  %742 = vmatprep.subr.mxu0 0.0
  %743 = vmatpush2.msra.mxu0 0.0
  %744 = vmatprep.subr.mxu0 0.0
  %745 = vmatpush2.msra.mxu0 0.0
  %746 = vmatprep.subr.mxu0 0.0
  %747 = vmatpush2.msra.mxu0 0.0
  %748 = vmatprep.subr.mxu0 0.0
  %749 = vmatpush2.msra.mxu0 0.0
  %750 = vmatprep.subr.mxu0 0.0
  %751 = vmatpush2.msra.mxu0 0.0
  %752 = vmatprep.subr.mxu0 0.0
  %753 = vmatpush2.msra.mxu0 0.0
  %754 = vmatprep.subr.mxu0 0.0
  %755 = vmatpush2.msra.mxu0 0.0
  %756 = vmatprep.subr.mxu0 0.0
  %757 = vmatpush2.msra.mxu0 0.0
  %758 = vmatprep.subr.mxu0 0.0
  %759 = vmatpush2.msra.mxu0 0.0
  %760 = vmatprep.subr.mxu0 0.0
  %761 = vmatpush2.msra.mxu0 0.0
  %762 = vmatprep.subr.mxu0 0.0
  %763 = vmatpush2.msra.mxu0 0.0
  %764 = vmatprep.subr.mxu0 0.0
  %765 = vmatpush2.msra.mxu0 0.0
  %766 = vmatprep.mubr.f32.mxu0 0.0
  %767 = vmatmul.mubr.f32.gmra.mxu0 %v565
  %v768 = vpop.f32.mrf.mxu0
  %v769 = vadd.f32 %v684, %v768
  %v770 = vpop.f32.mrf.mxu0
  %771 = vmatprep.mubr.f32.mxu0 0.0
  %772 = vmatmul.mubr.f32.gmra.mxu0 %v566
  %v773 = vpop.f32.mrf.mxu0
  %v774 = vadd.f32 %v689, %v773
  %v775 = vpop.f32.mrf.mxu0
  %776 = vmatprep.mubr.f32.mxu0 0.0
  %777 = vmatmul.mubr.f32.gmra.mxu0 %v567
  %v778 = vpop.f32.mrf.mxu0
  %v779 = vadd.f32 %v694, %v778
  %v780 = vpop.f32.mrf.mxu0
  %781 = vmatprep.mubr.f32.mxu0 0.0
  %782 = vmatmul.mubr.f32.gmra.mxu0 %v568
  %v783 = vpop.f32.mrf.mxu0
  %v784 = vadd.f32 %v699, %v783
  %v785 = vpop.f32.mrf.mxu0
  %786 = vdwg.mxu0
  %v787 = vld [vmem:[%s9] sm:$0x1]
  %v789 = vlaneseq
  %v790 = vshrl.u32 %v789, 7
  %v791 = vsub.s32 0, %v790
  %v792 = vrot.slane %v787, %v791
  %v794 = vmul.f32 %v769, %v792
  %v795 = vmul.f32 %v774, %v792
  %v796 = vmul.f32 %v779, %v792
  %v797 = vmul.f32 %v784, %v792
  %v798 = vld [vmem:[%s10] sm:$0x1]
  %v800 = vlaneseq
  %v801 = vshrl.u32 %v800, 7
  %v802 = vsub.s32 0, %v801
  %v803 = vrot.slane %v798, %v802
  %v805 = vadd.f32 %v794, %v803
  %v806 = vadd.f32 %v795, %v803
  %v807 = vadd.f32 %v796, %v803
  %v808 = vadd.f32 %v797, %v803
  %v809 = vmax.f32 %v805, 0.0
  %v810 = vmax.f32 %v806, 0.0
  %v811 = vmax.f32 %v807, 0.0
  %v812 = vmax.f32 %v808, 0.0
  %813 = vst [vmem:[%s11] sm:$0xff] %v809
  %814 = vst [vmem:[%s11 + $0x8] sm:$0xff] %v810
  %815 = vst [vmem:[%s11 + $0x10] sm:$0xff] %v811
  %816 = vst [vmem:[%s11 + $0x18] sm:$0xff] %v812
  // Predicated region
  $region46: #{decoder_forward.1} parent=0 // pred_check
    _
  $region47: #{decoder_forward.1} parent=0 // pred_check_branch
    %818 = sbr.rel (0) target = $region49
  $region48: #{decoder_forward.1} parent=0 // pred_region
    _
  $region49: #{decoder_forward.1} parent=0 // pred_fallthru
    _
  // Predicated region
  $region50: #{decoder_forward.1} parent=0 // pred_check
    _
  $region51: #{decoder_forward.1} parent=0 // pred_check_branch
    %820 = sbr.rel (0) target = $region53
  $region52: #{decoder_forward.1} parent=0 // pred_region
    _
  $region53: #{decoder_forward.1} parent=0 // pred_fallthru
    _

</llo_original>
